<compile_context>
chip_gen: v7x
topology: tpu7x:2x2x1
jax: 0.10.0
libtpu: 0.0.40
codegen_flags: <defaults>
</compile_context>

<pallas_src>
import math

import jax
import jax.numpy as jnp
from jax.experimental import pallas as pl
from jax.experimental.pallas import tpu as pltpu


def _dist_linear_kernel(x_ref, vt_ref, inv_x_ref, col_scale_ref, o_ref):
    """One (i, j) output tile; accumulates directly into the resident f32
    output block over the innermost K grid axis and applies the two
    precomputed scale vectors at the last K step."""
    k = pl.program_id(2)

    # bf16 operands, f32 accumulation on the MXU.
    partial = jnp.dot(x_ref[...], vt_ref[...],
                      preferred_element_type=jnp.float32)

    @pl.when(k == 0)
    def _():
        o_ref[...] = partial

    @pl.when(k > 0)
    def _():
        o_ref[...] += partial

    @pl.when(k == pl.num_programs(2) - 1)
    def _():
        # (tm,1) row scale * (1,tn) column scale, applied to the small tile.
        o_ref[...] *= inv_x_ref[...] * col_scale_ref[...]


def _round_up(a, m):
    return (a + m - 1) // m * m


def dist_linear(x, weight_v, weight_g, *, tm=None, tn=None, tk=None):
    """x: (B, indim) f32, weight_v: (outdim, indim) f32, weight_g: (outdim,) f32.

    Returns (B, outdim) f32 scores = 10 * cosine(x, W_eff rows).
    """
    B, indim = x.shape
    outdim = weight_v.shape[0]

    # ---- scale vectors, computed in f32 BEFORE any bf16 cast ----------------
    inv_x = 1.0 / (jnp.sqrt(jnp.sum(x * x, axis=1, keepdims=True)) + 1e-5)  # (B,1)
    col_scale = (10.0 * weight_g /
                 jnp.sqrt(jnp.sum(weight_v * weight_v, axis=1))
                 ).reshape(1, outdim)                                        # (1,N)

    # ---- tile selection ------------------------------------------------------
    # bf16 tiles: sublane dim multiple of 16, lane dim multiple of 128.
    if tm is None:
        tm = min(512, _round_up(B, 16))
    if tk is None:
        # For typical distLinear feature sizes this makes the K grid a single
        # step (no revisit of x / v^T across k).
        tk = min(1024, _round_up(indim, 128))
    if tn is None:
        np0 = _round_up(outdim, 128)
        tn = min(512, np0)
        # v7x megacore: if the whole batch fits one tm tile, keep >=2 column
        # blocks along the parallel axes when outdim allows.
        if _round_up(B, tm) == tm and np0 > 128:
            tn = min(tn, ((np0 // 128 + 1) // 2) * 128)

    Bp = _round_up(B, tm)
    Kp = _round_up(indim, tk)
    Np = _round_up(outdim, tn)

    # ---- pad + cast operands once in the wrapper ----------------------------
    xp = x.astype(jnp.bfloat16)
    if Bp != B or Kp != indim:
        xp = jnp.pad(xp, ((0, Bp - B), (0, Kp - indim)))

    vt = weight_v.T.astype(jnp.bfloat16)          # lane-dense [K, N] RHS
    if Kp != indim or Np != outdim:
        vt = jnp.pad(vt, ((0, Kp - indim), (0, Np - outdim)))

    inv_x_p = inv_x if Bp == B else jnp.pad(inv_x, ((0, Bp - B), (0, 0)))
    # Zero col_scale in padded columns -> padded output region is clean zeros.
    col_scale_p = (col_scale if Np == outdim
                   else jnp.pad(col_scale, ((0, 0), (0, Np - outdim))))

    grid = (Bp // tm, Np // tn, Kp // tk)

    out = pl.pallas_call(
        _dist_linear_kernel,
        out_shape=jax.ShapeDtypeStruct((Bp, Np), jnp.float32),
        grid_spec=pltpu.PrefetchScalarGridSpec(
            num_scalar_prefetch=0,
            grid=grid,
            in_specs=[
                pl.BlockSpec((tm, tk), lambda i, j, k: (i, k)),   # x (bf16)
                pl.BlockSpec((tk, tn), lambda i, j, k: (k, j)),   # v^T (bf16)
                pl.BlockSpec((tm, 1), lambda i, j, k: (i, 0)),    # 1/(||x||+eps)
                pl.BlockSpec((1, tn), lambda i, j, k: (0, j)),    # 10*g/||v||
            ],
            out_specs=pl.BlockSpec((tm, tn), lambda i, j, k: (i, j)),
        ),
        compiler_params=pltpu.CompilerParams(
            dimension_semantics=("parallel", "parallel", "arbitrary"),
            # Default tiles use ~6 MiB incl. double buffers; 32 MiB leaves
            # ample headroom even against v7x's 64 MiB physical VMEM.
            vmem_limit_bytes=32 * 1024 * 1024,
        ),
    )(xp, vt, inv_x_p, col_scale_p)

    return out[:B, :outdim]


def init_dist_linear_params(key, indim, outdim):
    """nn.Linear default init (kaiming-uniform bound) + weight_norm g = ||v||_row."""
    bound = 1.0 / math.sqrt(indim)
    v = jax.random.uniform(key, (outdim, indim), jnp.float32,
                           minval=-bound, maxval=bound)
    g = jnp.sqrt(jnp.sum(v * v, axis=1))   # (outdim,)
    return v, g


if __name__ == "__main__":
    # Small, deliberately non-tile-multiple shapes: exercises padding and both
    # a single-step grid (defaults) and a real multi-step (i,j,k) grid.
    B, indim, outdim = 10, 200, 150

    key = jax.random.PRNGKey(0)
    kx, kw = jax.random.split(key)
    x = jax.random.normal(kx, (B, indim), jnp.float32)
    weight_v, weight_g = init_dist_linear_params(kw, indim, outdim)

    # Pure-JAX f32 reference.
    x_n = x / (jnp.linalg.norm(x, axis=1, keepdims=True) + 1e-5)
    w_eff = weight_v * (weight_g[:, None] /
                        jnp.linalg.norm(weight_v, axis=1, keepdims=True))
    ref = 10.0 * (x_n @ w_eff.T)

    # 1) default tile selection (single K step, >=2 column blocks).
    scores = jax.block_until_ready(dist_linear(x, weight_v, weight_g))
    assert scores.shape == (B, outdim)
    # bf16 MXU operands -> loosened tolerance vs f32 reference.
    assert jnp.allclose(scores, ref, atol=8e-2, rtol=5e-2), \
        float(jnp.max(jnp.abs(scores - ref)))

    # 2) explicit small tiles: exercises the K-accumulation path (grid 1x2x2).
    scores2 = jax.block_until_ready(
        dist_linear(x, weight_v, weight_g, tm=16, tn=128, tk=128))
    assert scores2.shape == (B, outdim)
    assert jnp.allclose(scores2, ref, atol=8e-2, rtol=5e-2), \
        float(jnp.max(jnp.abs(scores2 - ref)))

    print("KERNEL_OK")
</pallas_src>

<mosaic_0001>
module attributes {stable_mosaic.version = 11 : i64} {
  func.func @_dist_linear_kernel(%arg0: i32, %arg1: i32, %arg2: i32, %arg3: memref<16x256xbf16, #tpu.memory_space<vmem>>, %arg4: memref<256x128xbf16, #tpu.memory_space<vmem>>, %arg5: memref<16x1xf32, #tpu.memory_space<vmem>>, %arg6: memref<1x128xf32, #tpu.memory_space<vmem>>, %arg7: memref<16x128xf32, #tpu.memory_space<vmem>>) attributes {dimension_semantics = [#tpu.dimension_semantics<parallel>, #tpu.dimension_semantics<parallel>, #tpu.dimension_semantics<arbitrary>], iteration_bounds = array<i64: 1, 2, 1>, scalar_prefetch = 0 : i64, scratch_operands = 0 : i64, tpu.core_type = #tpu.core_type<tc>, window_params = [{transform_indices = @transform_0, window_bounds = array<i64: 16, 256>}, {transform_indices = @transform_1, window_bounds = array<i64: 256, 128>}, {transform_indices = @transform_2, window_bounds = array<i64: 16, 1>}, {transform_indices = @transform_3, window_bounds = array<i64: 1, 128>}, {transform_indices = @transform_4, window_bounds = array<i64: 16, 128>}]} {
    %c0 = arith.constant 0 : index
    %c0_0 = arith.constant 0 : index
    %0 = vector.load %arg3[%c0, %c0_0] : memref<16x256xbf16, #tpu.memory_space<vmem>>, vector<16x256xbf16>
    %c0_1 = arith.constant 0 : index
    %c0_2 = arith.constant 0 : index
    %1 = vector.load %arg4[%c0_1, %c0_2] : memref<256x128xbf16, #tpu.memory_space<vmem>>, vector<256x128xbf16>
    %cst = arith.constant dense<0.000000e+00> : vector<16x128xf32>
    %2 = tpu.matmul %0, %1, %cst {dimension_numbers = #tpu.dot_dimension_numbers<[1], [0], [0], [1], [0, 0, 1, 1], [], []>} : vector<16x256xbf16>, vector<256x128xbf16>, vector<16x128xf32> -> vector<16x128xf32>
    %c0_i32 = arith.constant 0 : i32
    %3 = arith.cmpi eq, %arg2, %c0_i32 : i32
    %4 = arith.extui %3 : i1 to i32
    %c0_i32_3 = arith.constant 0 : i32
    %5 = arith.cmpi ne, %4, %c0_i32_3 : i32
    scf.if %5 {
      %c0_8 = arith.constant 0 : index
      %c0_9 = arith.constant 0 : index
      %12 = vector.load %arg7[%c0_8, %c0_9] : memref<16x128xf32, #tpu.memory_space<vmem>>, vector<16x128xf32>
      tpu.vector_store %arg7[%c0_8, %c0_9], %2 {strides = array<i32>} : memref<16x128xf32, #tpu.memory_space<vmem>>, vector<16x128xf32>,
    } else {
    }
    %c0_i32_4 = arith.constant 0 : i32
    %6 = arith.cmpi sgt, %arg2, %c0_i32_4 : i32
    %7 = arith.extui %6 : i1 to i32
    %c0_i32_5 = arith.constant 0 : i32
    %8 = arith.cmpi ne, %7, %c0_i32_5 : i32
    scf.if %8 {
      %c0_8 = arith.constant 0 : index
      %c0_9 = arith.constant 0 : index
      %12 = vector.load %arg7[%c0_8, %c0_9] : memref<16x128xf32, #tpu.memory_space<vmem>>, vector<16x128xf32>
      %13 = arith.addf %12, %2 : vector<16x128xf32>
      %c0_10 = arith.constant 0 : index
      %c0_11 = arith.constant 0 : index
      %14 = vector.load %arg7[%c0_10, %c0_11] : memref<16x128xf32, #tpu.memory_space<vmem>>, vector<16x128xf32>
      tpu.vector_store %arg7[%c0_10, %c0_11], %13 {strides = array<i32>} : memref<16x128xf32, #tpu.memory_space<vmem>>, vector<16x128xf32>,
    } else {
    }
    %c0_i32_6 = arith.constant 0 : i32
    %9 = arith.cmpi eq, %arg2, %c0_i32_6 : i32
    %10 = arith.extui %9 : i1 to i32
    %c0_i32_7 = arith.constant 0 : i32
    %11 = arith.cmpi ne, %10, %c0_i32_7 : i32
    scf.if %11 {
      %c0_8 = arith.constant 0 : index
      %c0_9 = arith.constant 0 : index
      %12 = vector.load %arg7[%c0_8, %c0_9] : memref<16x128xf32, #tpu.memory_space<vmem>>, vector<16x128xf32>
      %c0_10 = arith.constant 0 : index
      %c0_11 = arith.constant 0 : index
      %13 = vector.load %arg5[%c0_10, %c0_11] : memref<16x1xf32, #tpu.memory_space<vmem>>, vector<16x1xf32>
      %c0_12 = arith.constant 0 : index
      %c0_13 = arith.constant 0 : index
      %14 = vector.load %arg6[%c0_12, %c0_13] : memref<1x128xf32, #tpu.memory_space<vmem>>, vector<1x128xf32>
      %15 = vector.broadcast %13 : vector<16x1xf32> to vector<16x128xf32>
      %16 = vector.broadcast %14 : vector<1x128xf32> to vector<16x128xf32>
      %17 = arith.mulf %15, %16 : vector<16x128xf32>
      %18 = arith.mulf %12, %17 : vector<16x128xf32>
      %c0_14 = arith.constant 0 : index
      %c0_15 = arith.constant 0 : index
      %19 = vector.load %arg7[%c0_14, %c0_15] : memref<16x128xf32, #tpu.memory_space<vmem>>, vector<16x128xf32>
      tpu.vector_store %arg7[%c0_14, %c0_15], %18 {strides = array<i32>} : memref<16x128xf32, #tpu.memory_space<vmem>>, vector<16x128xf32>,
    } else {
    }
    return
  }
  func.func @transform_0(%arg0: i32, %arg1: i32, %arg2: i32) -> (i32, i32) {
    %c0_i32 = arith.constant 0 : i32
    return %arg0, %arg2 : i32, i32
  }
  func.func @transform_1(%arg0: i32, %arg1: i32, %arg2: i32) -> (i32, i32) {
    %c0_i32 = arith.constant 0 : i32
    return %arg2, %arg1 : i32, i32
  }
  func.func @transform_2(%arg0: i32, %arg1: i32, %arg2: i32) -> (i32, i32) {
    %c0_i32 = arith.constant 0 : i32
    %c0_i32_0 = arith.constant 0 : i32
    return %arg0, %c0_i32 : i32, i32
  }
  func.func @transform_3(%arg0: i32, %arg1: i32, %arg2: i32) -> (i32, i32) {
    %c0_i32 = arith.constant 0 : i32
    %c0_i32_0 = arith.constant 0 : i32
    return %c0_i32, %arg1 : i32, i32
  }
  func.func @transform_4(%arg0: i32, %arg1: i32, %arg2: i32) -> (i32, i32) {
    %c0_i32 = arith.constant 0 : i32
    return %arg0, %arg1 : i32, i32
  }
}

</mosaic_0001>

<llo_original>
// kernel: tpu_custom_call.1
$region0: #{tpu_custom_call.1}
  #allocation0 [shape = 'u32[]', space=smem, size = 0x4, offset = 0x4, fixed_abs, tag = 'smem constant byte address 0x4 - core index']
  #allocation1 [shape = 'u32[144,128]{1,0:T(1,128)}', space=vmem, size = 0x12000, scoped, tag = 'internal scratch']
  %s0 = inlined_call_operand.vmem [shape: bf16[16,256], index: 0, kind: input, shape index: {}]
  %s1 = inlined_call_operand.hbm [shape: bf16[256,256], index: 1, kind: input, shape index: {}]
  %s2 = inlined_call_operand.vmem [shape: f32[16,1], index: 2, kind: input, shape index: {}]
  %s3 = inlined_call_operand.vmem [shape: f32[1,256], index: 3, kind: input, shape index: {}]
  %s4 = inlined_call_operand.hbm [shape: f32[16,256], index: 4, kind: output, shape index: {}]
  %s5 = sld [smem:[#allocation0]]
  $region65: #{tpu_custom_call.1} parent=0
    _
  %s7 = ssub.s32 1, %s5
  %s8 = scalar_select 0, %s7, %s5
  $region1: #{tpu_custom_call.1} parent=0
    #allocation2 [shape = 'u8[131072]{0}', space=vmem, size = 0x20000, scoped, tag = 'input window, operand 1']
    #allocation3 [shape = 's32[2]{0}', space=sflag, size = 0x8, scoped, tag = 'scoped memory for tpu_custom_call.1']
    #allocation4 [shape = 's32[2]{0}', space=sflag, size = 0x8, scoped, tag = 'scoped memory for tpu_custom_call.1']
    #allocation5 [shape = 'u8[16384]{0}', space=vmem, size = 0x4000, scoped, tag = 'output window, operand 0']
    %9 = vsyncpa [#allocation3], 0
    %s10 = scalar_lea.sflag [#allocation3], 1
    %11 = vsyncpa %s10, 0
    %12 = vsyncpa [#allocation4], 0
    %s13 = scalar_lea.sflag [#allocation4], 1
    %14 = vsyncpa %s13, 0
    loop: start=0, step=1, limit=4
    $region2: #{tpu_custom_call.1} parent=1 // loop_pre_header
      _
    $region3: #{tpu_custom_call.1} parent=1 // loop_header
      %s16 = sphi 0, %s20
      %p17 = scmp.ge.s32.totalorder %s16, 4
      %s23 = sphi 0, %s42
      %s24 = sphi 0, %s38
      %s25 = sphi 0, %s34
      %s26 = sphi 0, %s23
      %s27 = sphi 0, %s24
      %s28 = sphi 0, %s25
      %s29 = sphi 0, %s26
      %s30 = sphi 0, %s27
      %s31 = sphi 0, %s28
      %s47 = sphi 0, %s49
      %s50 = sphi 0, %s47
      %s51 = sphi 0, %s50
      %s67 = sphi 0, %s51
      %s75 = sphi 0, %s77
      %s78 = sphi 0, %s75
      %s79 = sphi 0, %s78
      %s95 = sphi 0, %s79
      %s101 = sphi 0, %s103
      %s104 = sphi 0, %s101
      %s105 = sphi 0, %s104
      %s121 = sphi 0, %s105
      %s127 = sphi 0, %s129
      %s130 = sphi 0, %s127
      %s131 = sphi 0, %s130
      %s147 = sphi 0, %s131
      %s155 = sphi 0, %s157
      %s158 = sphi 0, %s155
      %s159 = sphi 0, %s158
      %s175 = sphi 0, %s159
    $region4: #{tpu_custom_call.1} parent=1 // loop_header_branch
      %19 = sbr.rel (%p17) target = $region8
    $region5: #{tpu_custom_call.1} parent=1 // loop_body
      %s21 = ssub.s32 %s16, 1
      %s22 = ssub.s32 %s16, 2
      %s32 = sadd.s32 1, %s25
      %p33 = scmp.ge.s32.totalorder %s32, 1
      %s34 = scalar_select %p33, 0, %s32
      %s35 = sadd.s32 1, %s24
      %s36 = scalar_select %p33, %s35, %s24
      %p37 = scmp.ge.s32.totalorder %s36, 2
      %s38 = scalar_select %p37, 0, %s36
      %s39 = sadd.s32 1, %s23
      %s40 = scalar_select %p37, %s39, %s23
      %p41 = scmp.ge.s32.totalorder %s40, 1
      %s42 = scalar_select %p41, 0, %s40
      %s43 = ssub.s32 %s23, %s42
      %s44 = ssub.s32 %s25, %s34
      %s45 = sor.u32 %s43, %s44
      %p46 = scmp.eq.s32.totalorder %s45, 0
      %s48 = sadd.s32 %s47, 1
      %s49 = scalar_select %p46, %s47, %s48
      %p52 = pneg %p46
      %p53 = scmp.eq.s32.totalorder %s16, 1
      %p54 = por %p52, %p53
      %p55 = scmp.ne.s32.totalorder %s47, %s50
      %p56 = scmp.eq.s32.totalorder %s16, 0
      %p57 = por %p55, %p56
      %p58 = scmp.ne.s32.totalorder %s47, %s50
      %p59 = scmp.eq.s32.totalorder %s21, 1
      %p60 = por %p58, %p59
      %p61 = scmp.ne.s32.totalorder %s50, %s51
      %p62 = scmp.eq.s32.totalorder %s21, 0
      %p63 = por %p61, %p62
      %p64 = scmp.ne.s32.totalorder %s50, %s51
      %p65 = scmp.eq.s32.totalorder %s22, 1
      %p66 = por %p64, %p65
      %p68 = scmp.ne.s32.totalorder %s51, %s67
      %p69 = scmp.eq.s32.totalorder %s22, 0
      %p70 = por %p68, %p69
      %s71 = ssub.s32 %s25, %s34
      %s72 = ssub.s32 %s24, %s38
      %s73 = sor.u32 %s71, %s72
      %p74 = scmp.eq.s32.totalorder %s73, 0
      %s76 = sadd.s32 %s75, 1
      %s77 = scalar_select %p74, %s75, %s76
      %p80 = pneg %p74
      %p81 = scmp.eq.s32.totalorder %s16, 1
      %p82 = por %p80, %p81
      %p83 = scmp.ne.s32.totalorder %s75, %s78
      %p84 = scmp.eq.s32.totalorder %s16, 0
      %p85 = por %p83, %p84
      %p86 = scmp.ne.s32.totalorder %s75, %s78
      %p87 = scmp.eq.s32.totalorder %s21, 1
      %p88 = por %p86, %p87
      %p89 = scmp.ne.s32.totalorder %s78, %s79
      %p90 = scmp.eq.s32.totalorder %s21, 0
      %p91 = por %p89, %p90
      %p92 = scmp.ne.s32.totalorder %s78, %s79
      %p93 = scmp.eq.s32.totalorder %s22, 1
      %p94 = por %p92, %p93
      %p96 = scmp.ne.s32.totalorder %s79, %s95
      %p97 = scmp.eq.s32.totalorder %s22, 0
      %p98 = por %p96, %p97
      %s99 = ssub.s32 %s23, %s42
      %p100 = scmp.eq.s32.totalorder %s99, 0
      %s102 = sadd.s32 %s101, 1
      %s103 = scalar_select %p100, %s101, %s102
      %p106 = pneg %p100
      %p107 = scmp.eq.s32.totalorder %s16, 1
      %p108 = por %p106, %p107
      %p109 = scmp.ne.s32.totalorder %s101, %s104
      %p110 = scmp.eq.s32.totalorder %s16, 0
      %p111 = por %p109, %p110
      %p112 = scmp.ne.s32.totalorder %s101, %s104
      %p113 = scmp.eq.s32.totalorder %s21, 1
      %p114 = por %p112, %p113
      %p115 = scmp.ne.s32.totalorder %s104, %s105
      %p116 = scmp.eq.s32.totalorder %s21, 0
      %p117 = por %p115, %p116
      %p118 = scmp.ne.s32.totalorder %s104, %s105
      %p119 = scmp.eq.s32.totalorder %s22, 1
      %p120 = por %p118, %p119
      %p122 = scmp.ne.s32.totalorder %s105, %s121
      %p123 = scmp.eq.s32.totalorder %s22, 0
      %p124 = por %p122, %p123
      %s125 = ssub.s32 %s24, %s38
      %p126 = scmp.eq.s32.totalorder %s125, 0
      %s128 = sadd.s32 %s127, 1
      %s129 = scalar_select %p126, %s127, %s128
      %p132 = pneg %p126
      %p133 = scmp.eq.s32.totalorder %s16, 1
      %p134 = por %p132, %p133
      %p135 = scmp.ne.s32.totalorder %s127, %s130
      %p136 = scmp.eq.s32.totalorder %s16, 0
      %p137 = por %p135, %p136
      %p138 = scmp.ne.s32.totalorder %s127, %s130
      %p139 = scmp.eq.s32.totalorder %s21, 1
      %p140 = por %p138, %p139
      %p141 = scmp.ne.s32.totalorder %s130, %s131
      %p142 = scmp.eq.s32.totalorder %s21, 0
      %p143 = por %p141, %p142
      %p144 = scmp.ne.s32.totalorder %s130, %s131
      %p145 = scmp.eq.s32.totalorder %s22, 1
      %p146 = por %p144, %p145
      %p148 = scmp.ne.s32.totalorder %s131, %s147
      %p149 = scmp.eq.s32.totalorder %s22, 0
      %p150 = por %p148, %p149
      %s151 = ssub.s32 %s23, %s42
      %s152 = ssub.s32 %s24, %s38
      %s153 = sor.u32 %s151, %s152
      %p154 = scmp.eq.s32.totalorder %s153, 0
      %s156 = sadd.s32 %s155, 1
      %s157 = scalar_select %p154, %s155, %s156
      %p160 = pneg %p154
      %p161 = scmp.eq.s32.totalorder %s16, 1
      %p162 = por %p160, %p161
      %p163 = scmp.ne.s32.totalorder %s155, %s158
      %p164 = scmp.eq.s32.totalorder %s16, 0
      %p165 = por %p163, %p164
      %p166 = scmp.ne.s32.totalorder %s155, %s158
      %p167 = scmp.eq.s32.totalorder %s21, 1
      %p168 = por %p166, %p167
      %p169 = scmp.ne.s32.totalorder %s158, %s159
      %p170 = scmp.eq.s32.totalorder %s21, 0
      %p171 = por %p169, %p170
      %p172 = scmp.ne.s32.totalorder %s158, %s159
      %p173 = scmp.eq.s32.totalorder %s22, 1
      %p174 = por %p172, %p173
      %p176 = scmp.ne.s32.totalorder %s159, %s175
      %p177 = scmp.eq.s32.totalorder %s22, 0
      %p178 = por %p176, %p177
      %p179 = scmp.le.s32.totalorder 1, %s16
      %p180 = scmp.lt.s32.totalorder %s16, 3
      %p181 = pnand %p179, %p180
      %p182 = pneg %p181
      // Predicated region
      $region9: #{tpu_custom_call.1} parent=5 // pred_check
        _
      $region10: #{tpu_custom_call.1} parent=5 // pred_check_branch
        %184 = sbr.rel (%p181) target = $region12
      $region11: #{tpu_custom_call.1} parent=5 // pred_region
        %s185 = ssub.s32 %s16, 1
        // Predicated region
        $region13: #{tpu_custom_call.1} parent=11 // pred_check
          %p186 = pneg %p63
        $region14: #{tpu_custom_call.1} parent=11 // pred_check_branch
          %188 = sbr.rel (%p186) target = $region16
        $region15: #{tpu_custom_call.1} parent=11 // pred_region
          %s189 = smul.u32 2, %s26
          %s190 = smul.u32 2, %s28
          %p191 = scmp.lt.s32.totalorder %s189, 1
          %s192 = scalar_select %p191, %s189, 1
          %p193 = scmp.lt.s32.totalorder %s190, 1
          %s194 = scalar_select %p193, %s190, 1
          %s195 = smul.addr %s192, 2
          %s196 = sadd.s32 %s194, %s195
          %s197 = smul.addr %s196, 4
          %s198 = scalar_lea.vmem %s0, %s197
          %s199 = smul.u32 2, %s26
          %s200 = smul.u32 2, %s28
        $region16: #{tpu_custom_call.1} parent=11 // pred_fallthru
          _
        // Predicated region
        $region17: #{tpu_custom_call.1} parent=11 // pred_check
          %p201 = pneg %p117
        $region18: #{tpu_custom_call.1} parent=11 // pred_check_branch
          %203 = sbr.rel (%p201) target = $region20
        $region19: #{tpu_custom_call.1} parent=11 // pred_region
          %s204 = smul.u32 2, %s26
          %p205 = scmp.lt.s32.totalorder %s204, 1
          %s206 = scalar_select %p205, %s204, 1
          %s207 = smul.addr %s206, 8
          %s208 = scalar_lea.vmem %s2, %s207
          %s209 = smul.u32 2, %s26
        $region20: #{tpu_custom_call.1} parent=11 // pred_fallthru
          _
      $region12: #{tpu_custom_call.1} parent=5 // pred_fallthru
        _
      %p210 = scmp.lt.s32.totalorder %s16, 2
      // Predicated region
      $region21: #{tpu_custom_call.1} parent=5 // pred_check
        %p211 = pneg %p210
      $region22: #{tpu_custom_call.1} parent=5 // pred_check_branch
        %213 = sbr.rel (%p211) target = $region24
      $region23: #{tpu_custom_call.1} parent=5 // pred_region
        // Predicated region
        $region25: #{tpu_custom_call.1} parent=23 // pred_check
          %p214 = pneg %p85
        $region26: #{tpu_custom_call.1} parent=23 // pred_check_branch
          %216 = sbr.rel (%p214) target = $region28
        $region27: #{tpu_custom_call.1} parent=23 // pred_region
          %s217 = sand.u32 %s75, 1
          %s218 = scalar_lea.sflag [#allocation3], %s217
          %s219 = sand.u32 %s75, 1
          %s220 = smul.addr %s219, 128
          %s221 = scalar_lea.vmem [#allocation2], %s220
          %s222 = smul.u32 32, %s25
          %s224 = ssub.s32 2048, 2048
          %225 = vsyncadd %s218, %s224
          %s226 = smul.addr %s222, 2
          %s227 = sadd.s32 %s24, %s226
          %s228 = smul.addr %s227, 64
          %s229 = scalar_lea.hbm %s1, %s228
          %s230 = sshll.u32 %s221, 4
          %s231 = int_to_ptr.vmem [resolvable:$true] %s230
          %236 = dma.hbm_to_vmem [thread:$0]  %s229, 2048, %s231, %s218, 128, 64, 4
        $region28: #{tpu_custom_call.1} parent=23 // pred_fallthru
          _
        // Predicated region
        $region29: #{tpu_custom_call.1} parent=23 // pred_check
          %p237 = pneg %p137
        $region30: #{tpu_custom_call.1} parent=23 // pred_check_branch
          %239 = sbr.rel (%p237) target = $region32
        $region31: #{tpu_custom_call.1} parent=23 // pred_region
          %p240 = scmp.lt.s32.totalorder %s24, 1
          %s241 = scalar_select %p240, %s24, 1
          %s242 = scalar_lea.vmem %s3, %s241
        $region32: #{tpu_custom_call.1} parent=23 // pred_fallthru
          _
      $region24: #{tpu_custom_call.1} parent=5 // pred_fallthru
        _
      %p243 = scmp.le.s32.totalorder 1, %s16
      %p244 = scmp.lt.s32.totalorder %s16, 3
      %p245 = pnand %p243, %p244
      %p246 = pneg %p245
      // Predicated region
      $region33: #{tpu_custom_call.1} parent=5 // pred_check
        _
      $region34: #{tpu_custom_call.1} parent=5 // pred_check_branch
        %248 = sbr.rel (%p245) target = $region36
      $region35: #{tpu_custom_call.1} parent=5 // pred_region
        %s249 = ssub.s32 %s16, 1
        %s250 = sand.u32 %s78, 1
        %s251 = scalar_lea.sflag [#allocation3], %s250
        %s252 = sand.u32 %s78, 1
        %s253 = smul.addr %s252, 128
        %s254 = scalar_lea.vmem [#allocation2], %s253
        // Predicated region
        $region37: #{tpu_custom_call.1} parent=35 // pred_check
          %p255 = pneg %p91
        $region38: #{tpu_custom_call.1} parent=35 // pred_check_branch
          %257 = sbr.rel (%p255) target = $region40
        $region39: #{tpu_custom_call.1} parent=35 // pred_region
          %258 = dma.done %s251, 2048
        $region40: #{tpu_custom_call.1} parent=35 // pred_fallthru
          _
        %s259 = smul.u32 2, %s26
        %s260 = smul.u32 2, %s28
        %p261 = scmp.lt.s32.totalorder %s259, 1
        %s262 = scalar_select %p261, %s259, 1
        %p263 = scmp.lt.s32.totalorder %s260, 1
        %s264 = scalar_select %p263, %s260, 1
        %s265 = smul.addr %s262, 2
        %s266 = sadd.s32 %s264, %s265
        %s267 = smul.addr %s266, 4
        %s268 = scalar_lea.vmem %s0, %s267
        %p269 = pneg %p63
        %p270 = pneg %p60
        %s271 = sand.u32 %s78, 1
        %s272 = scalar_lea.sflag [#allocation3], %s271
        %s273 = sand.u32 %s78, 1
        %s274 = smul.addr %s273, 128
        %s275 = scalar_lea.vmem [#allocation2], %s274
        %p276 = pneg %p91
        %p277 = pneg %p88
        %s278 = smul.u32 2, %s26
        %p279 = scmp.lt.s32.totalorder %s278, 1
        %s280 = scalar_select %p279, %s278, 1
        %s281 = smul.addr %s280, 8
        %s282 = scalar_lea.vmem %s2, %s281
        %p283 = pneg %p117
        %p284 = pneg %p114
        %p285 = scmp.lt.s32.totalorder %s27, 1
        %s286 = scalar_select %p285, %s27, 1
        %s287 = scalar_lea.vmem %s3, %s286
        %p288 = pneg %p143
        %p289 = pneg %p140
        %p290 = pneg %p171
        %p291 = pneg %p168
        %s292 = sand.u32 %s158, 1
        %s293 = scalar_lea.sflag [#allocation4], %s292
        %s294 = sand.u32 %s158, 1
        %s295 = smul.addr %s294, 16
        %s296 = scalar_lea.vmem [#allocation5], %s295
        %s297 = smul.u32 2, %s26
        %s298 = smul.u32 2, %s28
        %p299 = scmp.lt.s32.totalorder %s297, 1
        %s300 = scalar_select %p299, %s297, 1
        %p301 = scmp.lt.s32.totalorder %s298, 1
        %s302 = scalar_select %p301, %s298, 1
        %s303 = smul.addr %s300, 2
        %s304 = sadd.s32 %s302, %s303
        %s305 = smul.addr %s304, 4
        %s306 = scalar_lea.vmem %s0, %s305
        %s307 = smul.u32 2, %s26
        %s308 = smul.u32 2, %s28
        %s309 = smul.u32 32, %s28
        %s310 = smul.u32 2, %s26
        %p311 = scmp.lt.s32.totalorder %s310, 1
        %s312 = scalar_select %p311, %s310, 1
        %s313 = smul.addr %s312, 8
        %s314 = scalar_lea.vmem %s2, %s313
        %s315 = smul.u32 2, %s26
        %p316 = scmp.lt.s32.totalorder %s27, 1
        %s317 = scalar_select %p316, %s27, 1
        %s318 = scalar_lea.vmem %s3, %s317
        %s319 = smul.u32 2, %s26
        %v321 = vld [vmem:[%s306] sm:$0xff]
        %v322 = vld [vmem:[%s306 + $0x8] sm:$0xff]
        %v323 = vld [vmem:[%s254] sm:$0xf]
        %v324 = vld [vmem:[%s254 + $0x4] sm:$0xf]
        %v325 = vld [vmem:[%s254 + $0x8] sm:$0xf]
        %v326 = vld [vmem:[%s254 + $0xc] sm:$0xf]
        %v327 = vld [vmem:[%s254 + $0x10] sm:$0xf]
        %v328 = vld [vmem:[%s254 + $0x14] sm:$0xf]
        %v329 = vld [vmem:[%s254 + $0x18] sm:$0xf]
        %v330 = vld [vmem:[%s254 + $0x1c] sm:$0xf]
        %v331 = vld [vmem:[%s254 + $0x20] sm:$0xf]
        %v332 = vld [vmem:[%s254 + $0x24] sm:$0xf]
        %v333 = vld [vmem:[%s254 + $0x28] sm:$0xf]
        %v334 = vld [vmem:[%s254 + $0x2c] sm:$0xf]
        %v335 = vld [vmem:[%s254 + $0x30] sm:$0xf]
        %v336 = vld [vmem:[%s254 + $0x34] sm:$0xf]
        %v337 = vld [vmem:[%s254 + $0x38] sm:$0xf]
        %v338 = vld [vmem:[%s254 + $0x3c] sm:$0xf]
        %v339 = vld [vmem:[%s254 + $0x40] sm:$0xf]
        %v340 = vld [vmem:[%s254 + $0x44] sm:$0xf]
        %v341 = vld [vmem:[%s254 + $0x48] sm:$0xf]
        %v342 = vld [vmem:[%s254 + $0x4c] sm:$0xf]
        %v343 = vld [vmem:[%s254 + $0x50] sm:$0xf]
        %v344 = vld [vmem:[%s254 + $0x54] sm:$0xf]
        %v345 = vld [vmem:[%s254 + $0x58] sm:$0xf]
        %v346 = vld [vmem:[%s254 + $0x5c] sm:$0xf]
        %v347 = vld [vmem:[%s254 + $0x60] sm:$0xf]
        %v348 = vld [vmem:[%s254 + $0x64] sm:$0xf]
        %v349 = vld [vmem:[%s254 + $0x68] sm:$0xf]
        %v350 = vld [vmem:[%s254 + $0x6c] sm:$0xf]
        %v351 = vld [vmem:[%s254 + $0x70] sm:$0xf]
        %v352 = vld [vmem:[%s254 + $0x74] sm:$0xf]
        %v353 = vld [vmem:[%s254 + $0x78] sm:$0xf]
        %v354 = vld [vmem:[%s254 + $0x7c] sm:$0xf]
        %v357 = vunpack.c.l.b16 %v321
        %v358 = vunpack.c.h.b16 %v321
        %v359 = vunpack.c.l.b16 %v322
        %v360 = vunpack.c.h.b16 %v322
        %v361 = vpack.c.b16 %v359, %v357
        %v362 = vpack.c.b16 %v360, %v358
        %v397 = vunpack.c.l.b16 %v323
        %v398 = vunpack.c.l.b16 %v324
        %v399 = vunpack.c.l.b16 %v325
        %v400 = vunpack.c.l.b16 %v326
        %v401 = vunpack.c.l.b16 %v327
        %v402 = vunpack.c.l.b16 %v328
        %v403 = vunpack.c.l.b16 %v329
        %v404 = vunpack.c.l.b16 %v330
        %v405 = vunpack.c.l.b16 %v331
        %v406 = vunpack.c.l.b16 %v332
        %v407 = vunpack.c.l.b16 %v333
        %v408 = vunpack.c.l.b16 %v334
        %v409 = vunpack.c.l.b16 %v335
        %v410 = vunpack.c.l.b16 %v336
        %v411 = vunpack.c.l.b16 %v337
        %v412 = vunpack.c.l.b16 %v338
        %v413 = vunpack.c.l.b16 %v339
        %v414 = vunpack.c.l.b16 %v340
        %v415 = vunpack.c.l.b16 %v341
        %v416 = vunpack.c.l.b16 %v342
        %v417 = vunpack.c.l.b16 %v343
        %v418 = vunpack.c.l.b16 %v344
        %v419 = vunpack.c.l.b16 %v345
        %v420 = vunpack.c.l.b16 %v346
        %v421 = vunpack.c.l.b16 %v347
        %v422 = vunpack.c.l.b16 %v348
        %v423 = vunpack.c.l.b16 %v349
        %v424 = vunpack.c.l.b16 %v350
        %v425 = vunpack.c.l.b16 %v351
        %v426 = vunpack.c.l.b16 %v352
        %v427 = vunpack.c.l.b16 %v353
        %v428 = vunpack.c.l.b16 %v354
        %v429 = vpack.c.b16 %v398, %v397
        %v430 = vpack.c.b16 %v400, %v399
        %v431 = vpack.c.b16 %v402, %v401
        %v432 = vpack.c.b16 %v404, %v403
        %v433 = vpack.c.b16 %v406, %v405
        %v434 = vpack.c.b16 %v408, %v407
        %v435 = vpack.c.b16 %v410, %v409
        %v436 = vpack.c.b16 %v412, %v411
        %v437 = vpack.c.b16 %v414, %v413
        %v438 = vpack.c.b16 %v416, %v415
        %v439 = vpack.c.b16 %v418, %v417
        %v440 = vpack.c.b16 %v420, %v419
        %v441 = vpack.c.b16 %v422, %v421
        %v442 = vpack.c.b16 %v424, %v423
        %v443 = vpack.c.b16 %v426, %v425
        %v444 = vpack.c.b16 %v428, %v427
        %461 = vmatprep.subr.bf16.mxu0 0
        %462 = vmatpush1.bf16.msra.mxu0 %v429
        %463 = vmatprep.subr.bf16.mxu0 0
        %464 = vmatpush1.bf16.msra.mxu0 %v430
        %465 = vmatprep.subr.bf16.mxu0 0
        %466 = vmatpush1.bf16.msra.mxu0 %v431
        %467 = vmatprep.subr.bf16.mxu0 0
        %468 = vmatpush1.bf16.msra.mxu0 %v432
        %469 = vmatprep.subr.bf16.mxu0 0
        %470 = vmatpush1.bf16.msra.mxu0 %v433
        %471 = vmatprep.subr.bf16.mxu0 0
        %472 = vmatpush1.bf16.msra.mxu0 %v434
        %473 = vmatprep.subr.bf16.mxu0 0
        %474 = vmatpush1.bf16.msra.mxu0 %v435
        %475 = vmatprep.subr.bf16.mxu0 0
        %476 = vmatpush1.bf16.msra.mxu0 %v436
        %477 = vmatprep.subr.bf16.mxu0 0
        %478 = vmatpush1.bf16.msra.mxu0 %v437
        %479 = vmatprep.subr.bf16.mxu0 0
        %480 = vmatpush1.bf16.msra.mxu0 %v438
        %481 = vmatprep.subr.bf16.mxu0 0
        %482 = vmatpush1.bf16.msra.mxu0 %v439
        %483 = vmatprep.subr.bf16.mxu0 0
        %484 = vmatpush1.bf16.msra.mxu0 %v440
        %485 = vmatprep.subr.bf16.mxu0 0
        %486 = vmatpush1.bf16.msra.mxu0 %v441
        %487 = vmatprep.subr.bf16.mxu0 0
        %488 = vmatpush1.bf16.msra.mxu0 %v442
        %489 = vmatprep.subr.bf16.mxu0 0
        %490 = vmatpush1.bf16.msra.mxu0 %v443
        %491 = vmatprep.subr.bf16.mxu0 0
        %492 = vmatpush1.bf16.msra.mxu0 %v444
        %493 = vmatprep.mubr.bf16.mxu0 %v362
        %494 = vmatmul.mubr.bf16.gmra.mrb[0].mxu0 %v361
        %v495 = vpop.f32.mrb[0].mxu0
        %v496 = vadd.f32 0.0, %v495
        %v497 = vpop.f32.mrb[0].mxu0
        %v498 = vpop.f32.mrb[0].mxu0
        %v499 = vadd.f32 0.0, %v498
        %v500 = vpop.f32.mrb[0].mxu0
        %501 = vdwg.mxu0
        %p502 = scmp.eq.s32.totalorder %s28, 0
        // Predicated region
        $region41: #{tpu_custom_call.1} parent=35 // pred_check
          %p503 = pneg %p502
        $region42: #{tpu_custom_call.1} parent=35 // pred_check_branch
          %505 = sbr.rel (%p503) target = $region44
        $region43: #{tpu_custom_call.1} parent=35 // pred_region
          %506 = vst [vmem:[%s296] sm:$0xff] %v496
          %507 = vst [vmem:[%s296 + $0x8] sm:$0xff] %v499
        $region44: #{tpu_custom_call.1} parent=35 // pred_fallthru
          _
        %p508 = scmp.gt.s32.totalorder %s28, 0
        // Predicated region
        $region45: #{tpu_custom_call.1} parent=35 // pred_check
          %p509 = pneg %p508
        $region46: #{tpu_custom_call.1} parent=35 // pred_check_branch
          %511 = sbr.rel (%p509) target = $region48
        $region47: #{tpu_custom_call.1} parent=35 // pred_region
          %v512 = vld [vmem:[%s296] sm:$0xff]
          %v513 = vld [vmem:[%s296 + $0x8] sm:$0xff]
          %v514 = vadd.f32 %v512, %v496
          %v515 = vadd.f32 %v513, %v499
          %516 = vst [vmem:[%s296] sm:$0xff] %v514
          %517 = vst [vmem:[%s296 + $0x8] sm:$0xff] %v515
        $region48: #{tpu_custom_call.1} parent=35 // pred_fallthru
          _
        // Predicated region
        $region49: #{tpu_custom_call.1} parent=35 // pred_check
          %p518 = pneg %p502
        $region50: #{tpu_custom_call.1} parent=35 // pred_check_branch
          %520 = sbr.rel (%p518) target = $region52
        $region51: #{tpu_custom_call.1} parent=35 // pred_region
          %v521 = vld [vmem:[%s296] sm:$0xff]
          %v522 = vld [vmem:[%s296 + $0x8] sm:$0xff]
          %v523 = vld [vmem:[%s314] sm:$0xff]
          %v524 = vld [vmem:[%s314 + $0x8] sm:$0xff]
          %v525 = vld [vmem:[%s318] sm:$0x1]
          %527 = vset.pattern.permute.xlu0 0
          %528 = vperm.xlu0 %527, %v523
          %v529 = vpop.permute.xlu0 %528
          %532 = vset.pattern.permute.xlu0 0
          %533 = vperm.xlu0 %532, %v524
          %v534 = vpop.permute.xlu0 %533
          %v537 = vlaneseq
          %v538 = vshrl.u32 %v537, 7
          %v539 = vsub.s32 0, %v538
          %v540 = vrot.slane %v525, %v539
          %v542 = vmul.f32 %v529, %v540
          %v543 = vmul.f32 %v534, %v540
          %v544 = vmul.f32 %v521, %v542
          %v545 = vmul.f32 %v522, %v543
          %546 = vst [vmem:[%s296] sm:$0xff] %v544
          %547 = vst [vmem:[%s296 + $0x8] sm:$0xff] %v545
        $region52: #{tpu_custom_call.1} parent=35 // pred_fallthru
          _
        %s548 = sand.u32 %s158, 1
        %s549 = scalar_lea.sflag [#allocation4], %s548
        %s550 = sand.u32 %s158, 1
        %s551 = smul.addr %s550, 16
        %s552 = scalar_lea.vmem [#allocation5], %s551
        // Predicated region
        $region53: #{tpu_custom_call.1} parent=35 // pred_check
          %p553 = pneg %p168
        $region54: #{tpu_custom_call.1} parent=35 // pred_check_branch
          %555 = sbr.rel (%p553) target = $region56
        $region55: #{tpu_custom_call.1} parent=35 // pred_region
          %s556 = smul.u32 2, %s26
          %s558 = ssub.s32 256, 256
          %559 = vsyncadd %s549, %s558
          %s560 = smul.addr %s556, 2
          %s561 = sadd.s32 %s27, %s560
          %s562 = smul.addr %s561, 128
          %s563 = scalar_lea.hbm %s4, %s562
          %s564 = sshll.u32 %s552, 4
          %s565 = int_to_ptr.vmem [resolvable:$true] %s564
          %570 = dma.vmem_to_hbm [thread:$0]  %s565, 256, %s563, %s549, 128, 256, 8
        $region56: #{tpu_custom_call.1} parent=35 // pred_fallthru
          _
      $region36: #{tpu_custom_call.1} parent=5 // pred_fallthru
        _
      %p571 = scmp.le.s32.totalorder 2, %s16
      // Predicated region
      $region57: #{tpu_custom_call.1} parent=5 // pred_check
        %p572 = pneg %p571
      $region58: #{tpu_custom_call.1} parent=5 // pred_check_branch
        %574 = sbr.rel (%p572) target = $region60
      $region59: #{tpu_custom_call.1} parent=5 // pred_region
        %s575 = ssub.s32 %s16, 2
        // Predicated region
        $region61: #{tpu_custom_call.1} parent=59 // pred_check
          %p576 = pneg %p174
        $region62: #{tpu_custom_call.1} parent=59 // pred_check_branch
          %578 = sbr.rel (%p576) target = $region64
        $region63: #{tpu_custom_call.1} parent=59 // pred_region
          %s579 = sand.u32 %s159, 1
          %s580 = scalar_lea.sflag [#allocation4], %s579
          %s581 = sand.u32 %s159, 1
          %s582 = smul.addr %s581, 16
          %s583 = scalar_lea.vmem [#allocation5], %s582
          %584 = dma.done %s580, 256
        $region64: #{tpu_custom_call.1} parent=59 // pred_fallthru
          _
      $region60: #{tpu_custom_call.1} parent=5 // pred_fallthru
        _
    $region6: #{tpu_custom_call.1} parent=1 // loop_footer
      %s20 = sadd.s32 1, %s16
    $region7: #{tpu_custom_call.1} parent=1 // loop_footer_branch
      %15 = sbr.rel target = $region3
    $region8: #{tpu_custom_call.1} parent=1 // loop_exit
      _
    %585 = vsyncpa [#allocation3], 1
    %s586 = scalar_lea.sflag [#allocation3], 1
    %587 = vsyncpa %s586, 1
    %588 = vsyncpa [#allocation4], 1
    %s589 = scalar_lea.sflag [#allocation4], 1
    %590 = vsyncpa %s589, 1

</llo_original>
